<compile_context>
chip_gen: v7x
topology: tpu7x:2x2x1
jax: 0.10.0
libtpu: 0.0.40
codegen_flags: <defaults>
</compile_context>

<pallas_src>
import functools

import jax
import jax.numpy as jnp
from jax.experimental import pallas as pl
from jax.experimental.pallas import tpu as pltpu


def _round_up(x, m):
    return ((x + m - 1) // m) * m


def _probe_points_kernel(wmix_ref, w_ref, ax_ref, pos_ref, vx_ref, out_ref):
    # wmix_ref: (P, S, adim)   per-probe lin_mix weights (resident, tiny)
    # w_ref:    (P, vdim, 1)   per-probe vector weights
    # ax_ref:   (adim, TM)     activations, M in lanes
    # pos_ref:  (3, S, TM)     base points, M in lanes
    # vx_ref:   (3, vdim, TM)  translation-invariant vectors, M in lanes
    # out_ref:  (P, 3, TM)     probe points, M in lanes
    n_probe = wmix_ref.shape[0]

    axb = ax_ref[...]                                          # (adim, TM)
    pos = pos_ref[...]                                         # (3, S, TM)
    vx = vx_ref[...]                                           # (3, vdim, TM)

    for p in range(n_probe):                                   # tiny static unroll
        # lin_mix logits for probe point p (MXU): (S, TM)
        logits = jnp.dot(wmix_ref[p], axb, preferred_element_type=jnp.float32)

        # softmax over the base-point (sublane) axis.
        m = jnp.max(logits, axis=0, keepdims=True)             # (1, TM)
        e = jnp.exp(logits - m)                                # (S, TM)
        denom = jnp.sum(e, axis=0, keepdims=True)              # (1, TM)
        # EUP reciprocal; approx=False keeps full f32 accuracy for the check
        # (approx=True is fine if ~1e-3 softmax error is acceptable).
        mix = e * pl.reciprocal(denom, approx=False)           # (S, TM)

        # probe[v, m] = sum_s positions[v, s, m] * mix[s, m]
        probe = jnp.sum(pos * mix[None, :, :], axis=1)         # (3, TM)

        # delta[v, m] = sum_j W[p, j] * vx[v, j, m]
        delta = jnp.sum(vx * w_ref[p][None, :, :], axis=1)     # (3, TM)

        out_ref[p] = (probe + delta).astype(out_ref.dtype)     # (3, TM) dense store


def probe_points_pallas(ax, vx, positions_list, lin_mix_weight, W,
                        *, n_base_pts, n_probe_pts, tile_m=1024):
    """ax: (B, N, adim); vx: (B, N, vdim, 3); positions_list: list of (B, N, 3).
    lin_mix_weight: (n_base_pts * n_probe_pts, adim)  [torch nn.Linear layout]
    W: (n_probe_pts, vdim)
    returns: (n_probe_pts, B, N, 3)"""
    B, N, adim = ax.shape
    _, _, vdim, _ = vx.shape
    S, P = n_base_pts, n_probe_pts
    assert len(positions_list) == S
    M = B * N
    dtype = ax.dtype

    # Lane-friendly row tile: multiple of 128, no larger than needed; pad M.
    tm = _round_up(min(tile_m, _round_up(M, 128)), 128)
    M_pad = _round_up(M, tm)

    # ---- layout plumbing (plain JAX, outside the kernel): M-last everywhere ----
    positions = jnp.stack(positions_list, axis=2)                  # (B, N, S, 3)
    ax_t = ax.reshape(M, adim).T                                   # (adim, M)
    pos_t = positions.reshape(M, S, 3).transpose(2, 1, 0)          # (3, S, M)
    vx_t = vx.reshape(M, vdim, 3).transpose(2, 1, 0)               # (3, vdim, M)
    if M_pad != M:
        pad = M_pad - M
        ax_t = jnp.pad(ax_t, ((0, 0), (0, pad)))
        pos_t = jnp.pad(pos_t, ((0, 0), (0, 0), (0, pad)))
        vx_t = jnp.pad(vx_t, ((0, 0), (0, 0), (0, pad)))

    # torch nn.Linear layout: output feature f = s*P + p  ->  wmix3[p, s, a]
    wmix3 = lin_mix_weight.reshape(S, P, adim).transpose(1, 0, 2)  # (P, S, adim)
    w3 = W[:, :, None]                                             # (P, vdim, 1)

    grid = (M_pad // tm,)
    out = pl.pallas_call(
        _probe_points_kernel,
        out_shape=jax.ShapeDtypeStruct((P, 3, M_pad), dtype),
        grid_spec=pltpu.PrefetchScalarGridSpec(
            num_scalar_prefetch=0,
            grid=grid,
            in_specs=[
                pl.BlockSpec((P, S, adim), lambda i: (0, 0, 0)),   # weights stay resident
                pl.BlockSpec((P, vdim, 1), lambda i: (0, 0, 0)),
                pl.BlockSpec((adim, tm), lambda i: (0, i)),
                pl.BlockSpec((3, S, tm), lambda i: (0, 0, i)),
                pl.BlockSpec((3, vdim, tm), lambda i: (0, 0, i)),
            ],
            out_specs=pl.BlockSpec((P, 3, tm), lambda i: (0, 0, i)),
        ),
        compiler_params=pltpu.CompilerParams(
            dimension_semantics=("parallel",)),   # shard row tiles across TCs (v7x)
    )(wmix3, w3, ax_t, pos_t, vx_t)

    out = out[:, :, :M]                                            # drop row padding
    return out.transpose(0, 2, 1).reshape(P, B, N, 3)


def probe_points_reference(ax, vx, positions_list, lin_mix_weight, W,
                           *, n_base_pts, n_probe_pts):
    """Plain-JAX reference matching the PyTorch forward exactly."""
    B, N, adim = ax.shape
    positions = jnp.stack(positions_list, axis=2)                  # (B, N, S, 3)
    logits = jnp.einsum('bna,fa->bnf', ax, lin_mix_weight)
    logits = logits.reshape(B, N, n_base_pts, n_probe_pts)
    mix = jax.nn.softmax(logits, axis=2)
    probe = jnp.einsum('bnsv,bnsp->pbnv', positions, mix)
    delta = jnp.einsum('pj,bnjv->pbnv', W, vx)
    return probe + delta


if __name__ == "__main__":
    # Small, module-consistent shapes.
    batch, nodes = 2, 16
    adim, vdim = 32, 8
    n_base_pts, n_probe_pts = 4, 4

    key = jax.random.PRNGKey(0)
    k_ax, k_vx, k_pos, k_wmix, k_w = jax.random.split(key, 5)

    ax = jax.random.normal(k_ax, (batch, nodes, adim), dtype=jnp.float32)
    vx = jax.random.normal(k_vx, (batch, nodes, vdim, 3), dtype=jnp.float32)
    pos_keys = jax.random.split(k_pos, n_base_pts)
    positions_list = [jax.random.normal(k, (batch, nodes, 3), dtype=jnp.float32)
                      for k in pos_keys]

    # Deterministic parameter init (mirrors nn.Linear default + self_init).
    bound = 1.0 / (adim ** 0.5)
    lin_mix_weight = jax.random.uniform(
        k_wmix, (n_base_pts * n_probe_pts, adim),
        minval=-bound, maxval=bound, dtype=jnp.float32)
    W = jax.random.normal(k_w, (n_probe_pts, vdim), dtype=jnp.float32) * (vdim ** -0.5)

    fn = functools.partial(probe_points_pallas,
                           n_base_pts=n_base_pts, n_probe_pts=n_probe_pts)
    out = jax.block_until_ready(fn(ax, vx, positions_list, lin_mix_weight, W))

    ref = probe_points_reference(ax, vx, positions_list, lin_mix_weight, W,
                                 n_base_pts=n_base_pts, n_probe_pts=n_probe_pts)
    assert out.shape == (n_probe_pts, batch, nodes, 3)
    assert jnp.allclose(out, ref, rtol=1e-5, atol=1e-5), "mismatch vs JAX reference"
    print("KERNEL_OK")
</pallas_src>

<mosaic_0001>
module attributes {stable_mosaic.version = 11 : i64} {
  func.func @_probe_points_kernel(%arg0: i32, %arg1: memref<4x4x32xf32, #tpu.memory_space<vmem>>, %arg2: memref<4x8x1xf32, #tpu.memory_space<vmem>>, %arg3: memref<32x128xf32, #tpu.memory_space<vmem>>, %arg4: memref<3x4x128xf32, #tpu.memory_space<vmem>>, %arg5: memref<3x8x128xf32, #tpu.memory_space<vmem>>, %arg6: memref<4x3x128xf32, #tpu.memory_space<vmem>>) attributes {dimension_semantics = [#tpu.dimension_semantics<parallel>], iteration_bounds = array<i64: 1>, scalar_prefetch = 0 : i64, scratch_operands = 0 : i64, tpu.core_type = #tpu.core_type<tc>, window_params = [{pipeline_mode = #tpu.pipeline_mode<synchronous>, transform_indices = @transform_0, window_bounds = array<i64: 4, 4, 32>}, {pipeline_mode = #tpu.pipeline_mode<synchronous>, transform_indices = @transform_1, window_bounds = array<i64: 4, 8, 1>}, {transform_indices = @transform_2, window_bounds = array<i64: 32, 128>}, {transform_indices = @transform_3, window_bounds = array<i64: 3, 4, 128>}, {transform_indices = @transform_4, window_bounds = array<i64: 3, 8, 128>}, {transform_indices = @transform_5, window_bounds = array<i64: 4, 3, 128>}]} {
    %c0 = arith.constant 0 : index
    %c0_0 = arith.constant 0 : index
    %0 = vector.load %arg3[%c0, %c0_0] : memref<32x128xf32, #tpu.memory_space<vmem>>, vector<32x128xf32>
    %c0_1 = arith.constant 0 : index
    %c0_2 = arith.constant 0 : index
    %c0_3 = arith.constant 0 : index
    %1 = vector.load %arg4[%c0_1, %c0_2, %c0_3] : memref<3x4x128xf32, #tpu.memory_space<vmem>>, vector<3x4x128xf32>
    %c0_4 = arith.constant 0 : index
    %c0_5 = arith.constant 0 : index
    %c0_6 = arith.constant 0 : index
    %2 = vector.load %arg5[%c0_4, %c0_5, %c0_6] : memref<3x8x128xf32, #tpu.memory_space<vmem>>, vector<3x8x128xf32>
    %c0_7 = arith.constant 0 : index
    %c0_8 = arith.constant 0 : index
    %c0_9 = arith.constant 0 : index
    %3 = vector.load %arg1[%c0_7, %c0_8, %c0_9] : memref<4x4x32xf32, #tpu.memory_space<vmem>>, vector<1x4x32xf32>
    %4 = vector.shape_cast %3 : vector<1x4x32xf32> to vector<4x32xf32>
    %cst = arith.constant dense<0.000000e+00> : vector<4x128xf32>
    %5 = tpu.matmul %4, %0, %cst {dimension_numbers = #tpu.dot_dimension_numbers<[1], [0], [0], [1], [0, 0, 1, 1], [], []>} : vector<4x32xf32>, vector<32x128xf32>, vector<4x128xf32> -> vector<4x128xf32>
    %cst_10 = arith.constant dense<0xFF800000> : vector<128xf32>
    %6 = vector.multi_reduction <maximumf>, %5, %cst_10 [0] : vector<4x128xf32> to vector<128xf32>
    %7 = vector.shape_cast %6 : vector<128xf32> to vector<1x128xf32>
    %8 = vector.broadcast %7 : vector<1x128xf32> to vector<4x128xf32>
    %9 = arith.subf %5, %8 : vector<4x128xf32>
    %10 = math.exp %9 : vector<4x128xf32>
    %cst_11 = arith.constant dense<0.000000e+00> : vector<128xf32>
    %11 = vector.multi_reduction <add>, %10, %cst_11 [0] : vector<4x128xf32> to vector<128xf32>
    %12 = vector.shape_cast %11 : vector<128xf32> to vector<1x128xf32>
    %13 = tpu.reciprocal %12 : vector<1x128xf32> -> vector<1x128xf32>
    %14 = vector.broadcast %13 : vector<1x128xf32> to vector<4x128xf32>
    %15 = arith.mulf %10, %14 : vector<4x128xf32>
    %16 = vector.shape_cast %15 : vector<4x128xf32> to vector<1x4x128xf32>
    %17 = vector.broadcast %16 : vector<1x4x128xf32> to vector<3x4x128xf32>
    %18 = arith.mulf %1, %17 : vector<3x4x128xf32>
    %cst_12 = arith.constant dense<0.000000e+00> : vector<3x128xf32>
    %19 = vector.multi_reduction <add>, %18, %cst_12 [1] : vector<3x4x128xf32> to vector<3x128xf32>
    %c0_13 = arith.constant 0 : index
    %c0_14 = arith.constant 0 : index
    %c0_15 = arith.constant 0 : index
    %20 = vector.load %arg2[%c0_13, %c0_14, %c0_15] : memref<4x8x1xf32, #tpu.memory_space<vmem>>, vector<1x8x1xf32>
    %21 = vector.shape_cast %20 : vector<1x8x1xf32> to vector<8x1xf32>
    %22 = vector.shape_cast %21 : vector<8x1xf32> to vector<1x8x1xf32>
    %23 = vector.broadcast %22 : vector<1x8x1xf32> to vector<3x8x128xf32>
    %24 = arith.mulf %2, %23 : vector<3x8x128xf32>
    %cst_16 = arith.constant dense<0.000000e+00> : vector<3x128xf32>
    %25 = vector.multi_reduction <add>, %24, %cst_16 [1] : vector<3x8x128xf32> to vector<3x128xf32>
    %26 = arith.addf %19, %25 : vector<3x128xf32>
    %c0_17 = arith.constant 0 : index
    %c0_18 = arith.constant 0 : index
    %c0_19 = arith.constant 0 : index
    %27 = vector.load %arg6[%c0_17, %c0_18, %c0_19] : memref<4x3x128xf32, #tpu.memory_space<vmem>>, vector<1x3x128xf32>
    %28 = vector.shape_cast %27 : vector<1x3x128xf32> to vector<3x128xf32>
    %29 = vector.shape_cast %26 : vector<3x128xf32> to vector<1x3x128xf32>
    tpu.vector_store %arg6[%c0_17, %c0_18, %c0_19], %29 {strides = array<i32>} : memref<4x3x128xf32, #tpu.memory_space<vmem>>, vector<1x3x128xf32>,
    %c1 = arith.constant 1 : index
    %c0_20 = arith.constant 0 : index
    %c0_21 = arith.constant 0 : index
    %30 = vector.load %arg1[%c1, %c0_20, %c0_21] : memref<4x4x32xf32, #tpu.memory_space<vmem>>, vector<1x4x32xf32>
    %31 = vector.shape_cast %30 : vector<1x4x32xf32> to vector<4x32xf32>
    %cst_22 = arith.constant dense<0.000000e+00> : vector<4x128xf32>
    %32 = tpu.matmul %31, %0, %cst_22 {dimension_numbers = #tpu.dot_dimension_numbers<[1], [0], [0], [1], [0, 0, 1, 1], [], []>} : vector<4x32xf32>, vector<32x128xf32>, vector<4x128xf32> -> vector<4x128xf32>
    %cst_23 = arith.constant dense<0xFF800000> : vector<128xf32>
    %33 = vector.multi_reduction <maximumf>, %32, %cst_23 [0] : vector<4x128xf32> to vector<128xf32>
    %34 = vector.shape_cast %33 : vector<128xf32> to vector<1x128xf32>
    %35 = vector.broadcast %34 : vector<1x128xf32> to vector<4x128xf32>
    %36 = arith.subf %32, %35 : vector<4x128xf32>
    %37 = math.exp %36 : vector<4x128xf32>
    %cst_24 = arith.constant dense<0.000000e+00> : vector<128xf32>
    %38 = vector.multi_reduction <add>, %37, %cst_24 [0] : vector<4x128xf32> to vector<128xf32>
    %39 = vector.shape_cast %38 : vector<128xf32> to vector<1x128xf32>
    %40 = tpu.reciprocal %39 : vector<1x128xf32> -> vector<1x128xf32>
    %41 = vector.broadcast %40 : vector<1x128xf32> to vector<4x128xf32>
    %42 = arith.mulf %37, %41 : vector<4x128xf32>
    %43 = vector.shape_cast %42 : vector<4x128xf32> to vector<1x4x128xf32>
    %44 = vector.broadcast %43 : vector<1x4x128xf32> to vector<3x4x128xf32>
    %45 = arith.mulf %1, %44 : vector<3x4x128xf32>
    %cst_25 = arith.constant dense<0.000000e+00> : vector<3x128xf32>
    %46 = vector.multi_reduction <add>, %45, %cst_25 [1] : vector<3x4x128xf32> to vector<3x128xf32>
    %c1_26 = arith.constant 1 : index
    %c0_27 = arith.constant 0 : index
    %c0_28 = arith.constant 0 : index
    %47 = vector.load %arg2[%c1_26, %c0_27, %c0_28] : memref<4x8x1xf32, #tpu.memory_space<vmem>>, vector<1x8x1xf32>
    %48 = vector.shape_cast %47 : vector<1x8x1xf32> to vector<8x1xf32>
    %49 = vector.shape_cast %48 : vector<8x1xf32> to vector<1x8x1xf32>
    %50 = vector.broadcast %49 : vector<1x8x1xf32> to vector<3x8x128xf32>
    %51 = arith.mulf %2, %50 : vector<3x8x128xf32>
    %cst_29 = arith.constant dense<0.000000e+00> : vector<3x128xf32>
    %52 = vector.multi_reduction <add>, %51, %cst_29 [1] : vector<3x8x128xf32> to vector<3x128xf32>
    %53 = arith.addf %46, %52 : vector<3x128xf32>
    %c1_30 = arith.constant 1 : index
    %c0_31 = arith.constant 0 : index
    %c0_32 = arith.constant 0 : index
    %54 = vector.load %arg6[%c1_30, %c0_31, %c0_32] : memref<4x3x128xf32, #tpu.memory_space<vmem>>, vector<1x3x128xf32>
    %55 = vector.shape_cast %54 : vector<1x3x128xf32> to vector<3x128xf32>
    %56 = vector.shape_cast %53 : vector<3x128xf32> to vector<1x3x128xf32>
    tpu.vector_store %arg6[%c1_30, %c0_31, %c0_32], %56 {strides = array<i32>} : memref<4x3x128xf32, #tpu.memory_space<vmem>>, vector<1x3x128xf32>,
    %c2 = arith.constant 2 : index
    %c0_33 = arith.constant 0 : index
    %c0_34 = arith.constant 0 : index
    %57 = vector.load %arg1[%c2, %c0_33, %c0_34] : memref<4x4x32xf32, #tpu.memory_space<vmem>>, vector<1x4x32xf32>
    %58 = vector.shape_cast %57 : vector<1x4x32xf32> to vector<4x32xf32>
    %cst_35 = arith.constant dense<0.000000e+00> : vector<4x128xf32>
    %59 = tpu.matmul %58, %0, %cst_35 {dimension_numbers = #tpu.dot_dimension_numbers<[1], [0], [0], [1], [0, 0, 1, 1], [], []>} : vector<4x32xf32>, vector<32x128xf32>, vector<4x128xf32> -> vector<4x128xf32>
    %cst_36 = arith.constant dense<0xFF800000> : vector<128xf32>
    %60 = vector.multi_reduction <maximumf>, %59, %cst_36 [0] : vector<4x128xf32> to vector<128xf32>
    %61 = vector.shape_cast %60 : vector<128xf32> to vector<1x128xf32>
    %62 = vector.broadcast %61 : vector<1x128xf32> to vector<4x128xf32>
    %63 = arith.subf %59, %62 : vector<4x128xf32>
    %64 = math.exp %63 : vector<4x128xf32>
    %cst_37 = arith.constant dense<0.000000e+00> : vector<128xf32>
    %65 = vector.multi_reduction <add>, %64, %cst_37 [0] : vector<4x128xf32> to vector<128xf32>
    %66 = vector.shape_cast %65 : vector<128xf32> to vector<1x128xf32>
    %67 = tpu.reciprocal %66 : vector<1x128xf32> -> vector<1x128xf32>
    %68 = vector.broadcast %67 : vector<1x128xf32> to vector<4x128xf32>
    %69 = arith.mulf %64, %68 : vector<4x128xf32>
    %70 = vector.shape_cast %69 : vector<4x128xf32> to vector<1x4x128xf32>
    %71 = vector.broadcast %70 : vector<1x4x128xf32> to vector<3x4x128xf32>
    %72 = arith.mulf %1, %71 : vector<3x4x128xf32>
    %cst_38 = arith.constant dense<0.000000e+00> : vector<3x128xf32>
    %73 = vector.multi_reduction <add>, %72, %cst_38 [1] : vector<3x4x128xf32> to vector<3x128xf32>
    %c2_39 = arith.constant 2 : index
    %c0_40 = arith.constant 0 : index
    %c0_41 = arith.constant 0 : index
    %74 = vector.load %arg2[%c2_39, %c0_40, %c0_41] : memref<4x8x1xf32, #tpu.memory_space<vmem>>, vector<1x8x1xf32>
    %75 = vector.shape_cast %74 : vector<1x8x1xf32> to vector<8x1xf32>
    %76 = vector.shape_cast %75 : vector<8x1xf32> to vector<1x8x1xf32>
    %77 = vector.broadcast %76 : vector<1x8x1xf32> to vector<3x8x128xf32>
    %78 = arith.mulf %2, %77 : vector<3x8x128xf32>
    %cst_42 = arith.constant dense<0.000000e+00> : vector<3x128xf32>
    %79 = vector.multi_reduction <add>, %78, %cst_42 [1] : vector<3x8x128xf32> to vector<3x128xf32>
    %80 = arith.addf %73, %79 : vector<3x128xf32>
    %c2_43 = arith.constant 2 : index
    %c0_44 = arith.constant 0 : index
    %c0_45 = arith.constant 0 : index
    %81 = vector.load %arg6[%c2_43, %c0_44, %c0_45] : memref<4x3x128xf32, #tpu.memory_space<vmem>>, vector<1x3x128xf32>
    %82 = vector.shape_cast %81 : vector<1x3x128xf32> to vector<3x128xf32>
    %83 = vector.shape_cast %80 : vector<3x128xf32> to vector<1x3x128xf32>
    tpu.vector_store %arg6[%c2_43, %c0_44, %c0_45], %83 {strides = array<i32>} : memref<4x3x128xf32, #tpu.memory_space<vmem>>, vector<1x3x128xf32>,
    %c3 = arith.constant 3 : index
    %c0_46 = arith.constant 0 : index
    %c0_47 = arith.constant 0 : index
    %84 = vector.load %arg1[%c3, %c0_46, %c0_47] : memref<4x4x32xf32, #tpu.memory_space<vmem>>, vector<1x4x32xf32>
    %85 = vector.shape_cast %84 : vector<1x4x32xf32> to vector<4x32xf32>
    %cst_48 = arith.constant dense<0.000000e+00> : vector<4x128xf32>
    %86 = tpu.matmul %85, %0, %cst_48 {dimension_numbers = #tpu.dot_dimension_numbers<[1], [0], [0], [1], [0, 0, 1, 1], [], []>} : vector<4x32xf32>, vector<32x128xf32>, vector<4x128xf32> -> vector<4x128xf32>
    %cst_49 = arith.constant dense<0xFF800000> : vector<128xf32>
    %87 = vector.multi_reduction <maximumf>, %86, %cst_49 [0] : vector<4x128xf32> to vector<128xf32>
    %88 = vector.shape_cast %87 : vector<128xf32> to vector<1x128xf32>
    %89 = vector.broadcast %88 : vector<1x128xf32> to vector<4x128xf32>
    %90 = arith.subf %86, %89 : vector<4x128xf32>
    %91 = math.exp %90 : vector<4x128xf32>
    %cst_50 = arith.constant dense<0.000000e+00> : vector<128xf32>
    %92 = vector.multi_reduction <add>, %91, %cst_50 [0] : vector<4x128xf32> to vector<128xf32>
    %93 = vector.shape_cast %92 : vector<128xf32> to vector<1x128xf32>
    %94 = tpu.reciprocal %93 : vector<1x128xf32> -> vector<1x128xf32>
    %95 = vector.broadcast %94 : vector<1x128xf32> to vector<4x128xf32>
    %96 = arith.mulf %91, %95 : vector<4x128xf32>
    %97 = vector.shape_cast %96 : vector<4x128xf32> to vector<1x4x128xf32>
    %98 = vector.broadcast %97 : vector<1x4x128xf32> to vector<3x4x128xf32>
    %99 = arith.mulf %1, %98 : vector<3x4x128xf32>
    %cst_51 = arith.constant dense<0.000000e+00> : vector<3x128xf32>
    %100 = vector.multi_reduction <add>, %99, %cst_51 [1] : vector<3x4x128xf32> to vector<3x128xf32>
    %c3_52 = arith.constant 3 : index
    %c0_53 = arith.constant 0 : index
    %c0_54 = arith.constant 0 : index
    %101 = vector.load %arg2[%c3_52, %c0_53, %c0_54] : memref<4x8x1xf32, #tpu.memory_space<vmem>>, vector<1x8x1xf32>
    %102 = vector.shape_cast %101 : vector<1x8x1xf32> to vector<8x1xf32>
    %103 = vector.shape_cast %102 : vector<8x1xf32> to vector<1x8x1xf32>
    %104 = vector.broadcast %103 : vector<1x8x1xf32> to vector<3x8x128xf32>
    %105 = arith.mulf %2, %104 : vector<3x8x128xf32>
    %cst_55 = arith.constant dense<0.000000e+00> : vector<3x128xf32>
    %106 = vector.multi_reduction <add>, %105, %cst_55 [1] : vector<3x8x128xf32> to vector<3x128xf32>
    %107 = arith.addf %100, %106 : vector<3x128xf32>
    %c3_56 = arith.constant 3 : index
    %c0_57 = arith.constant 0 : index
    %c0_58 = arith.constant 0 : index
    %108 = vector.load %arg6[%c3_56, %c0_57, %c0_58] : memref<4x3x128xf32, #tpu.memory_space<vmem>>, vector<1x3x128xf32>
    %109 = vector.shape_cast %108 : vector<1x3x128xf32> to vector<3x128xf32>
    %110 = vector.shape_cast %107 : vector<3x128xf32> to vector<1x3x128xf32>
    tpu.vector_store %arg6[%c3_56, %c0_57, %c0_58], %110 {strides = array<i32>} : memref<4x3x128xf32, #tpu.memory_space<vmem>>, vector<1x3x128xf32>,
    return
  }
  func.func @transform_0(%arg0: i32) -> (i32, i32, i32) {
    %c0_i32 = arith.constant 0 : i32
    %c0_i32_0 = arith.constant 0 : i32
    %c0_i32_1 = arith.constant 0 : i32
    %c0_i32_2 = arith.constant 0 : i32
    return %c0_i32, %c0_i32_0, %c0_i32_1 : i32, i32, i32
  }
  func.func @transform_1(%arg0: i32) -> (i32, i32, i32) {
    %c0_i32 = arith.constant 0 : i32
    %c0_i32_0 = arith.constant 0 : i32
    %c0_i32_1 = arith.constant 0 : i32
    %c0_i32_2 = arith.constant 0 : i32
    return %c0_i32, %c0_i32_0, %c0_i32_1 : i32, i32, i32
  }
  func.func @transform_2(%arg0: i32) -> (i32, i32) {
    %c0_i32 = arith.constant 0 : i32
    %c0_i32_0 = arith.constant 0 : i32
    return %c0_i32, %arg0 : i32, i32
  }
  func.func @transform_3(%arg0: i32) -> (i32, i32, i32) {
    %c0_i32 = arith.constant 0 : i32
    %c0_i32_0 = arith.constant 0 : i32
    %c0_i32_1 = arith.constant 0 : i32
    return %c0_i32, %c0_i32_0, %arg0 : i32, i32, i32
  }
  func.func @transform_4(%arg0: i32) -> (i32, i32, i32) {
    %c0_i32 = arith.constant 0 : i32
    %c0_i32_0 = arith.constant 0 : i32
    %c0_i32_1 = arith.constant 0 : i32
    return %c0_i32, %c0_i32_0, %arg0 : i32, i32, i32
  }
  func.func @transform_5(%arg0: i32) -> (i32, i32, i32) {
    %c0_i32 = arith.constant 0 : i32
    %c0_i32_0 = arith.constant 0 : i32
    %c0_i32_1 = arith.constant 0 : i32
    return %c0_i32, %c0_i32_0, %arg0 : i32, i32, i32
  }
}

</mosaic_0001>

<llo_original>
// kernel: tpu_custom_call.1
$region0: #{tpu_custom_call.1}
  #allocation0 [shape = 'u32[]', space=smem, size = 0x4, offset = 0x4, fixed_abs, tag = 'smem constant byte address 0x4 - core index']
  #allocation1 [shape = 'u32[144,128]{1,0:T(1,128)}', space=vmem, size = 0x12000, scoped, tag = 'internal scratch']
  %s0 = inlined_call_operand.hbm [shape: f32[4,4,32], index: 0, kind: input, shape index: {}]
  %s1 = inlined_call_operand.vmem [shape: f32[4,8,1], index: 1, kind: input, shape index: {}]
  %s2 = inlined_call_operand.vmem [shape: f32[32,128], index: 2, kind: input, shape index: {}]
  %s3 = inlined_call_operand.vmem [shape: f32[3,4,128], index: 3, kind: input, shape index: {}]
  %s4 = inlined_call_operand.hbm [shape: f32[3,8,128], index: 4, kind: input, shape index: {}]
  %s5 = inlined_call_operand.vmem [shape: f32[4,3,128], index: 5, kind: output, shape index: {}]
  %s6 = sld [smem:[#allocation0]]
  $region38: #{tpu_custom_call.1} parent=0
    _
  %s8 = ssub.s32 1, %s6
  %s9 = scalar_select 0, %s8, %s6
  $region1: #{tpu_custom_call.1} parent=0
    #allocation2 [shape = 'u8[8192]{0}', space=vmem, size = 0x2000, scoped, tag = 'input window, operand 0, single buffered']
    #allocation3 [shape = 's32[1]{0}', space=sflag, size = 0x4, scoped, tag = 'scoped memory for tpu_custom_call.1']
    #allocation4 [shape = 'u8[12288]{0}', space=vmem, size = 0x3000, scoped, tag = 'input window, operand 4, single buffered']
    #allocation5 [shape = 's32[1]{0}', space=sflag, size = 0x4, scoped, tag = 'scoped memory for tpu_custom_call.1']
    %10 = vsyncpa [#allocation3], 0
    %11 = vsyncpa [#allocation5], 0
    // Predicated region
    $region2: #{tpu_custom_call.1} parent=1 // pred_check
      _
    $region3: #{tpu_custom_call.1} parent=1 // pred_check_branch
      %13 = sbr.rel (0) target = $region5
    $region4: #{tpu_custom_call.1} parent=1 // pred_region
      %s15 = ssub.s32 256, 256
      %16 = vsyncadd [#allocation3], %s15
      %s17 = sshll.u32 [#allocation2], 4
      %s18 = int_to_ptr.vmem [resolvable:$true] %s17
      %23 = dma.hbm_to_vmem [thread:$0]  %s0, 256, %s18, [#allocation3], 64, 64, 4
    $region5: #{tpu_custom_call.1} parent=1 // pred_fallthru
      _
    // Predicated region
    $region6: #{tpu_custom_call.1} parent=1 // pred_check
      _
    $region7: #{tpu_custom_call.1} parent=1 // pred_check_branch
      %25 = sbr.rel (0) target = $region9
    $region8: #{tpu_custom_call.1} parent=1 // pred_region
      _
    $region9: #{tpu_custom_call.1} parent=1 // pred_fallthru
      _
    // Predicated region
    $region10: #{tpu_custom_call.1} parent=1 // pred_check
      _
    $region11: #{tpu_custom_call.1} parent=1 // pred_check_branch
      %27 = sbr.rel (0) target = $region13
    $region12: #{tpu_custom_call.1} parent=1 // pred_region
      _
    $region13: #{tpu_custom_call.1} parent=1 // pred_fallthru
      _
    // Predicated region
    $region14: #{tpu_custom_call.1} parent=1 // pred_check
      _
    $region15: #{tpu_custom_call.1} parent=1 // pred_check_branch
      %29 = sbr.rel (0) target = $region17
    $region16: #{tpu_custom_call.1} parent=1 // pred_region
      _
    $region17: #{tpu_custom_call.1} parent=1 // pred_fallthru
      _
    // Predicated region
    $region18: #{tpu_custom_call.1} parent=1 // pred_check
      _
    $region19: #{tpu_custom_call.1} parent=1 // pred_check_branch
      %31 = sbr.rel (0) target = $region21
    $region20: #{tpu_custom_call.1} parent=1 // pred_region
      %s33 = ssub.s32 384, 384
      %34 = vsyncadd [#allocation5], %s33
      %s35 = sshll.u32 [#allocation4], 4
      %s36 = int_to_ptr.vmem [resolvable:$true] %s35
      %41 = dma.hbm_to_vmem [thread:$0]  %s4, 384, %s36, [#allocation5], 128, 128, 8
    $region21: #{tpu_custom_call.1} parent=1 // pred_fallthru
      _
    // Predicated region
    $region22: #{tpu_custom_call.1} parent=1 // pred_check
      _
    $region23: #{tpu_custom_call.1} parent=1 // pred_check_branch
      %43 = sbr.rel (0) target = $region25
    $region24: #{tpu_custom_call.1} parent=1 // pred_region
      %44 = dma.done [#allocation3], 256
    $region25: #{tpu_custom_call.1} parent=1 // pred_fallthru
      _
    // Predicated region
    $region26: #{tpu_custom_call.1} parent=1 // pred_check
      _
    $region27: #{tpu_custom_call.1} parent=1 // pred_check_branch
      %46 = sbr.rel (0) target = $region29
    $region28: #{tpu_custom_call.1} parent=1 // pred_region
      %47 = dma.done [#allocation5], 384
    $region29: #{tpu_custom_call.1} parent=1 // pred_fallthru
      _
    %v48 = vld [vmem:[%s2] sm:$0xff]
    %v49 = vld [vmem:[%s2 + $0x8] sm:$0xff]
    %v50 = vld [vmem:[%s2 + $0x10] sm:$0xff]
    %v51 = vld [vmem:[%s2 + $0x18] sm:$0xff]
    %v52 = vld [vmem:[%s3] sm:$0xf]
    %v53 = vld [vmem:[%s3 + $0x4] sm:$0xf]
    %v54 = vld [vmem:[%s3 + $0x8] sm:$0xf]
    %v55 = vld [vmem:[#allocation4] sm:$0xff]
    %v56 = vld [vmem:[#allocation4 + $0x8] sm:$0xff]
    %v57 = vld [vmem:[#allocation4 + $0x10] sm:$0xff]
    %v58 = vld [vmem:[#allocation2] sm:$0xf]
    %vm59 = vcmask 261120
    %v61 = vsel %vm59, %v58, 0
    %63 = vmatprep.subr.mxu0 0.0
    %64 = vmatpush1.msra.mxu0 %v48
    %65 = vmatprep.subr.mxu0 0.0
    %66 = vmatpush1.msra.mxu0 %v49
    %67 = vmatprep.subr.mxu0 0.0
    %68 = vmatpush1.msra.mxu0 %v50
    %69 = vmatprep.subr.mxu0 0.0
    %70 = vmatpush1.msra.mxu0 %v51
    %71 = vmatprep.subr.mxu0 0.0
    %72 = vmatpush1.msra.mxu0 0.0
    %73 = vmatprep.subr.mxu0 0.0
    %74 = vmatpush1.msra.mxu0 0.0
    %75 = vmatprep.subr.mxu0 0.0
    %76 = vmatpush1.msra.mxu0 0.0
    %77 = vmatprep.subr.mxu0 0.0
    %78 = vmatpush1.msra.mxu0 0.0
    %79 = vmatprep.subr.mxu0 0.0
    %80 = vmatpush1.msra.mxu0 0.0
    %81 = vmatprep.subr.mxu0 0.0
    %82 = vmatpush1.msra.mxu0 0.0
    %83 = vmatprep.subr.mxu0 0.0
    %84 = vmatpush1.msra.mxu0 0.0
    %85 = vmatprep.subr.mxu0 0.0
    %86 = vmatpush1.msra.mxu0 0.0
    %87 = vmatprep.subr.mxu0 0.0
    %88 = vmatpush1.msra.mxu0 0.0
    %89 = vmatprep.subr.mxu0 0.0
    %90 = vmatpush1.msra.mxu0 0.0
    %91 = vmatprep.subr.mxu0 0.0
    %92 = vmatpush1.msra.mxu0 0.0
    %93 = vmatprep.subr.mxu0 0.0
    %94 = vmatpush1.msra.mxu0 0.0
    %95 = vmatprep.subr.mxu0 0.0
    %96 = vmatpush1.msra.mxu0 0.0
    %97 = vmatprep.subr.mxu0 0.0
    %98 = vmatpush1.msra.mxu0 0.0
    %99 = vmatprep.subr.mxu0 0.0
    %100 = vmatpush1.msra.mxu0 0.0
    %101 = vmatprep.subr.mxu0 0.0
    %102 = vmatpush1.msra.mxu0 0.0
    %103 = vmatprep.subr.mxu0 0.0
    %104 = vmatpush1.msra.mxu0 0.0
    %105 = vmatprep.subr.mxu0 0.0
    %106 = vmatpush1.msra.mxu0 0.0
    %107 = vmatprep.subr.mxu0 0.0
    %108 = vmatpush1.msra.mxu0 0.0
    %109 = vmatprep.subr.mxu0 0.0
    %110 = vmatpush1.msra.mxu0 0.0
    %111 = vmatprep.subr.mxu0 0.0
    %112 = vmatpush1.msra.mxu0 0.0
    %113 = vmatprep.subr.mxu0 0.0
    %114 = vmatpush1.msra.mxu0 0.0
    %115 = vmatprep.subr.mxu0 0.0
    %116 = vmatpush1.msra.mxu0 0.0
    %117 = vmatprep.subr.mxu0 0.0
    %118 = vmatpush1.msra.mxu0 0.0
    %119 = vmatprep.subr.mxu0 0.0
    %120 = vmatpush1.msra.mxu0 0.0
    %121 = vmatprep.subr.mxu0 0.0
    %122 = vmatpush1.msra.mxu0 0.0
    %123 = vmatprep.subr.mxu0 0.0
    %124 = vmatpush1.msra.mxu0 0.0
    %125 = vmatprep.subr.mxu0 0.0
    %126 = vmatpush1.msra.mxu0 0.0
    %127 = vmatprep.mubr.f32.mxu0 0.0
    %128 = vmatmul.mubr.f32.gmra.mrb[0].mxu0 %v61
    %v129 = vpop.f32.mrb[0].mxu0
    %v130 = vadd.f32 0.0, %v129
    %v131 = vpop.f32.mrb[0].mxu0
    %132 = vdwg.mxu0
    %vm133 = vcmask 1043456
    %v134 = vsel %vm133, %v130, -inf
    %v135 = vrot.slane %v134, 4
    %v136 = vmax.f32 %v134, %v135
    %v137 = vrot.slane %v136, 2
    %v138 = vmax.f32 %v136, %v137
    %v139 = vrot.slane %v138, 1
    %v140 = vmax.f32 %v138, %v139
    %v141 = vsub.f32 %v130, %v140
    %v142 = vmul.f32 %v141, 1.442695
    %v143 = vpow.pop %v142
    %v144 = vsel %vm133, %v143, 0.0
    %v145 = vrot.slane %v144, 4
    %v146 = vadd.f32 %v144, %v145
    %v147 = vrot.slane %v146, 2
    %v148 = vadd.f32 %v146, %v147
    %v149 = vrot.slane %v148, 1
    %v150 = vadd.f32 %v148, %v149
    %v151 = vrcp.pop %v150
    %v152 = vmul.f32 %v143, %v151
    %v153 = vmul.f32 %v52, %v152
    %v154 = vmul.f32 %v53, %v152
    %v155 = vmul.f32 %v54, %v152
    %v156 = vsel %vm133, %v153, 0.0
    %v157 = vrot.slane %v156, 4
    %v158 = vadd.f32 %v156, %v157
    %v159 = vrot.slane %v158, 2
    %v160 = vadd.f32 %v158, %v159
    %v161 = vrot.slane %v160, 1
    %v162 = vadd.f32 %v160, %v161
    %v163 = vsel %vm133, %v154, 0.0
    %v164 = vrot.slane %v163, 4
    %v165 = vadd.f32 %v163, %v164
    %v166 = vrot.slane %v165, 2
    %v167 = vadd.f32 %v165, %v166
    %v168 = vrot.slane %v167, 1
    %v169 = vadd.f32 %v167, %v168
    %v170 = vsel %vm133, %v155, 0.0
    %v171 = vrot.slane %v170, 4
    %v172 = vadd.f32 %v170, %v171
    %v173 = vrot.slane %v172, 2
    %v174 = vadd.f32 %v172, %v173
    %v175 = vrot.slane %v174, 1
    %v176 = vadd.f32 %v174, %v175
    %v177 = vld [vmem:[%s1] sm:$0xff]
    %179 = vset.pattern.permute.xlu0 0
    %180 = vperm.xlu0 %179, %v177
    %v181 = vpop.permute.xlu0 %180
    %v183 = vmul.f32 %v55, %v181
    %v184 = vmul.f32 %v56, %v181
    %v185 = vmul.f32 %v57, %v181
    %v186 = vrot.slane %v183, 4
    %v187 = vadd.f32 %v183, %v186
    %v188 = vrot.slane %v187, 2
    %v189 = vadd.f32 %v187, %v188
    %v190 = vrot.slane %v189, 1
    %v191 = vadd.f32 %v189, %v190
    %v192 = vrot.slane %v184, 4
    %v193 = vadd.f32 %v184, %v192
    %v194 = vrot.slane %v193, 2
    %v195 = vadd.f32 %v193, %v194
    %v196 = vrot.slane %v195, 1
    %v197 = vadd.f32 %v195, %v196
    %v198 = vrot.slane %v185, 4
    %v199 = vadd.f32 %v185, %v198
    %v200 = vrot.slane %v199, 2
    %v201 = vadd.f32 %v199, %v200
    %v202 = vrot.slane %v201, 1
    %v203 = vadd.f32 %v201, %v202
    %v204 = vadd.f32 %v162, %v191
    %v205 = vadd.f32 %v169, %v197
    %v206 = vadd.f32 %v176, %v203
    %vm210 = vcmask 1041409
    %v211 = vsel %vm210, %v205, %v204
    %vm212 = vcmask 1042434
    %v213 = vsel %vm212, %v206, %v211
    %215 = vst [vmem:[%s5] sm:$0x7] %v213
    %s216 = scalar_lea.vmem [#allocation2], 4
    %v217 = vld [vmem:[%s216] sm:$0xf]
    %v219 = vsel %vm59, %v217, 0
    %221 = vmatprep.subr.mxu0 0.0
    %222 = vmatpush1.msra.mxu0 %v48
    %223 = vmatprep.subr.mxu0 0.0
    %224 = vmatpush1.msra.mxu0 %v49
    %225 = vmatprep.subr.mxu0 0.0
    %226 = vmatpush1.msra.mxu0 %v50
    %227 = vmatprep.subr.mxu0 0.0
    %228 = vmatpush1.msra.mxu0 %v51
    %229 = vmatprep.subr.mxu0 0.0
    %230 = vmatpush1.msra.mxu0 0.0
    %231 = vmatprep.subr.mxu0 0.0
    %232 = vmatpush1.msra.mxu0 0.0
    %233 = vmatprep.subr.mxu0 0.0
    %234 = vmatpush1.msra.mxu0 0.0
    %235 = vmatprep.subr.mxu0 0.0
    %236 = vmatpush1.msra.mxu0 0.0
    %237 = vmatprep.subr.mxu0 0.0
    %238 = vmatpush1.msra.mxu0 0.0
    %239 = vmatprep.subr.mxu0 0.0
    %240 = vmatpush1.msra.mxu0 0.0
    %241 = vmatprep.subr.mxu0 0.0
    %242 = vmatpush1.msra.mxu0 0.0
    %243 = vmatprep.subr.mxu0 0.0
    %244 = vmatpush1.msra.mxu0 0.0
    %245 = vmatprep.subr.mxu0 0.0
    %246 = vmatpush1.msra.mxu0 0.0
    %247 = vmatprep.subr.mxu0 0.0
    %248 = vmatpush1.msra.mxu0 0.0
    %249 = vmatprep.subr.mxu0 0.0
    %250 = vmatpush1.msra.mxu0 0.0
    %251 = vmatprep.subr.mxu0 0.0
    %252 = vmatpush1.msra.mxu0 0.0
    %253 = vmatprep.subr.mxu0 0.0
    %254 = vmatpush1.msra.mxu0 0.0
    %255 = vmatprep.subr.mxu0 0.0
    %256 = vmatpush1.msra.mxu0 0.0
    %257 = vmatprep.subr.mxu0 0.0
    %258 = vmatpush1.msra.mxu0 0.0
    %259 = vmatprep.subr.mxu0 0.0
    %260 = vmatpush1.msra.mxu0 0.0
    %261 = vmatprep.subr.mxu0 0.0
    %262 = vmatpush1.msra.mxu0 0.0
    %263 = vmatprep.subr.mxu0 0.0
    %264 = vmatpush1.msra.mxu0 0.0
    %265 = vmatprep.subr.mxu0 0.0
    %266 = vmatpush1.msra.mxu0 0.0
    %267 = vmatprep.subr.mxu0 0.0
    %268 = vmatpush1.msra.mxu0 0.0
    %269 = vmatprep.subr.mxu0 0.0
    %270 = vmatpush1.msra.mxu0 0.0
    %271 = vmatprep.subr.mxu0 0.0
    %272 = vmatpush1.msra.mxu0 0.0
    %273 = vmatprep.subr.mxu0 0.0
    %274 = vmatpush1.msra.mxu0 0.0
    %275 = vmatprep.subr.mxu0 0.0
    %276 = vmatpush1.msra.mxu0 0.0
    %277 = vmatprep.subr.mxu0 0.0
    %278 = vmatpush1.msra.mxu0 0.0
    %279 = vmatprep.subr.mxu0 0.0
    %280 = vmatpush1.msra.mxu0 0.0
    %281 = vmatprep.subr.mxu0 0.0
    %282 = vmatpush1.msra.mxu0 0.0
    %283 = vmatprep.subr.mxu0 0.0
    %284 = vmatpush1.msra.mxu0 0.0
    %285 = vmatprep.mubr.f32.mxu0 0.0
    %286 = vmatmul.mubr.f32.gmra.mrb[0].mxu0 %v219
    %v287 = vpop.f32.mrb[0].mxu0
    %v288 = vadd.f32 0.0, %v287
    %v289 = vpop.f32.mrb[0].mxu0
    %290 = vdwg.mxu0
    %v291 = vsel %vm133, %v288, -inf
    %v292 = vrot.slane %v291, 4
    %v293 = vmax.f32 %v291, %v292
    %v294 = vrot.slane %v293, 2
    %v295 = vmax.f32 %v293, %v294
    %v296 = vrot.slane %v295, 1
    %v297 = vmax.f32 %v295, %v296
    %v298 = vsub.f32 %v288, %v297
    %v299 = vmul.f32 %v298, 1.442695
    %v300 = vpow.pop %v299
    %v301 = vsel %vm133, %v300, 0.0
    %v302 = vrot.slane %v301, 4
    %v303 = vadd.f32 %v301, %v302
    %v304 = vrot.slane %v303, 2
    %v305 = vadd.f32 %v303, %v304
    %v306 = vrot.slane %v305, 1
    %v307 = vadd.f32 %v305, %v306
    %v308 = vrcp.pop %v307
    %v309 = vmul.f32 %v300, %v308
    %v310 = vmul.f32 %v52, %v309
    %v311 = vmul.f32 %v53, %v309
    %v312 = vmul.f32 %v54, %v309
    %v313 = vsel %vm133, %v310, 0.0
    %v314 = vrot.slane %v313, 4
    %v315 = vadd.f32 %v313, %v314
    %v316 = vrot.slane %v315, 2
    %v317 = vadd.f32 %v315, %v316
    %v318 = vrot.slane %v317, 1
    %v319 = vadd.f32 %v317, %v318
    %v320 = vsel %vm133, %v311, 0.0
    %v321 = vrot.slane %v320, 4
    %v322 = vadd.f32 %v320, %v321
    %v323 = vrot.slane %v322, 2
    %v324 = vadd.f32 %v322, %v323
    %v325 = vrot.slane %v324, 1
    %v326 = vadd.f32 %v324, %v325
    %v327 = vsel %vm133, %v312, 0.0
    %v328 = vrot.slane %v327, 4
    %v329 = vadd.f32 %v327, %v328
    %v330 = vrot.slane %v329, 2
    %v331 = vadd.f32 %v329, %v330
    %v332 = vrot.slane %v331, 1
    %v333 = vadd.f32 %v331, %v332
    %s334 = scalar_lea.vmem %s1, 8
    %v335 = vld [vmem:[%s334] sm:$0xff]
    %337 = vset.pattern.permute.xlu0 0
    %338 = vperm.xlu0 %337, %v335
    %v339 = vpop.permute.xlu0 %338
    %v341 = vmul.f32 %v55, %v339
    %v342 = vmul.f32 %v56, %v339
    %v343 = vmul.f32 %v57, %v339
    %v344 = vrot.slane %v341, 4
    %v345 = vadd.f32 %v341, %v344
    %v346 = vrot.slane %v345, 2
    %v347 = vadd.f32 %v345, %v346
    %v348 = vrot.slane %v347, 1
    %v349 = vadd.f32 %v347, %v348
    %v350 = vrot.slane %v342, 4
    %v351 = vadd.f32 %v342, %v350
    %v352 = vrot.slane %v351, 2
    %v353 = vadd.f32 %v351, %v352
    %v354 = vrot.slane %v353, 1
    %v355 = vadd.f32 %v353, %v354
    %v356 = vrot.slane %v343, 4
    %v357 = vadd.f32 %v343, %v356
    %v358 = vrot.slane %v357, 2
    %v359 = vadd.f32 %v357, %v358
    %v360 = vrot.slane %v359, 1
    %v361 = vadd.f32 %v359, %v360
    %v362 = vadd.f32 %v319, %v349
    %v363 = vadd.f32 %v326, %v355
    %v364 = vadd.f32 %v333, %v361
    %v368 = vsel %vm210, %v363, %v362
    %v369 = vsel %vm212, %v364, %v368
    %s371 = scalar_lea.vmem %s5, 4
    %372 = vst [vmem:[%s371] sm:$0x7] %v369
    %s373 = scalar_lea.vmem [#allocation2], 8
    %v374 = vld [vmem:[%s373] sm:$0xf]
    %v376 = vsel %vm59, %v374, 0
    %378 = vmatprep.subr.mxu0 0.0
    %379 = vmatpush1.msra.mxu0 %v48
    %380 = vmatprep.subr.mxu0 0.0
    %381 = vmatpush1.msra.mxu0 %v49
    %382 = vmatprep.subr.mxu0 0.0
    %383 = vmatpush1.msra.mxu0 %v50
    %384 = vmatprep.subr.mxu0 0.0
    %385 = vmatpush1.msra.mxu0 %v51
    %386 = vmatprep.subr.mxu0 0.0
    %387 = vmatpush1.msra.mxu0 0.0
    %388 = vmatprep.subr.mxu0 0.0
    %389 = vmatpush1.msra.mxu0 0.0
    %390 = vmatprep.subr.mxu0 0.0
    %391 = vmatpush1.msra.mxu0 0.0
    %392 = vmatprep.subr.mxu0 0.0
    %393 = vmatpush1.msra.mxu0 0.0
    %394 = vmatprep.subr.mxu0 0.0
    %395 = vmatpush1.msra.mxu0 0.0
    %396 = vmatprep.subr.mxu0 0.0
    %397 = vmatpush1.msra.mxu0 0.0
    %398 = vmatprep.subr.mxu0 0.0
    %399 = vmatpush1.msra.mxu0 0.0
    %400 = vmatprep.subr.mxu0 0.0
    %401 = vmatpush1.msra.mxu0 0.0
    %402 = vmatprep.subr.mxu0 0.0
    %403 = vmatpush1.msra.mxu0 0.0
    %404 = vmatprep.subr.mxu0 0.0
    %405 = vmatpush1.msra.mxu0 0.0
    %406 = vmatprep.subr.mxu0 0.0
    %407 = vmatpush1.msra.mxu0 0.0
    %408 = vmatprep.subr.mxu0 0.0
    %409 = vmatpush1.msra.mxu0 0.0
    %410 = vmatprep.subr.mxu0 0.0
    %411 = vmatpush1.msra.mxu0 0.0
    %412 = vmatprep.subr.mxu0 0.0
    %413 = vmatpush1.msra.mxu0 0.0
    %414 = vmatprep.subr.mxu0 0.0
    %415 = vmatpush1.msra.mxu0 0.0
    %416 = vmatprep.subr.mxu0 0.0
    %417 = vmatpush1.msra.mxu0 0.0
    %418 = vmatprep.subr.mxu0 0.0
    %419 = vmatpush1.msra.mxu0 0.0
    %420 = vmatprep.subr.mxu0 0.0
    %421 = vmatpush1.msra.mxu0 0.0
    %422 = vmatprep.subr.mxu0 0.0
    %423 = vmatpush1.msra.mxu0 0.0
    %424 = vmatprep.subr.mxu0 0.0
    %425 = vmatpush1.msra.mxu0 0.0
    %426 = vmatprep.subr.mxu0 0.0
    %427 = vmatpush1.msra.mxu0 0.0
    %428 = vmatprep.subr.mxu0 0.0
    %429 = vmatpush1.msra.mxu0 0.0
    %430 = vmatprep.subr.mxu0 0.0
    %431 = vmatpush1.msra.mxu0 0.0
    %432 = vmatprep.subr.mxu0 0.0
    %433 = vmatpush1.msra.mxu0 0.0
    %434 = vmatprep.subr.mxu0 0.0
    %435 = vmatpush1.msra.mxu0 0.0
    %436 = vmatprep.subr.mxu0 0.0
    %437 = vmatpush1.msra.mxu0 0.0
    %438 = vmatprep.subr.mxu0 0.0
    %439 = vmatpush1.msra.mxu0 0.0
    %440 = vmatprep.subr.mxu0 0.0
    %441 = vmatpush1.msra.mxu0 0.0
    %442 = vmatprep.mubr.f32.mxu0 0.0
    %443 = vmatmul.mubr.f32.gmra.mrb[0].mxu0 %v376
    %v444 = vpop.f32.mrb[0].mxu0
    %v445 = vadd.f32 0.0, %v444
    %v446 = vpop.f32.mrb[0].mxu0
    %447 = vdwg.mxu0
    %v448 = vsel %vm133, %v445, -inf
    %v449 = vrot.slane %v448, 4
    %v450 = vmax.f32 %v448, %v449
    %v451 = vrot.slane %v450, 2
    %v452 = vmax.f32 %v450, %v451
    %v453 = vrot.slane %v452, 1
    %v454 = vmax.f32 %v452, %v453
    %v455 = vsub.f32 %v445, %v454
    %v456 = vmul.f32 %v455, 1.442695
    %v457 = vpow.pop %v456
    %v458 = vsel %vm133, %v457, 0.0
    %v459 = vrot.slane %v458, 4
    %v460 = vadd.f32 %v458, %v459
    %v461 = vrot.slane %v460, 2
    %v462 = vadd.f32 %v460, %v461
    %v463 = vrot.slane %v462, 1
    %v464 = vadd.f32 %v462, %v463
    %v465 = vrcp.pop %v464
    %v466 = vmul.f32 %v457, %v465
    %v467 = vmul.f32 %v52, %v466
    %v468 = vmul.f32 %v53, %v466
    %v469 = vmul.f32 %v54, %v466
    %v470 = vsel %vm133, %v467, 0.0
    %v471 = vrot.slane %v470, 4
    %v472 = vadd.f32 %v470, %v471
    %v473 = vrot.slane %v472, 2
    %v474 = vadd.f32 %v472, %v473
    %v475 = vrot.slane %v474, 1
    %v476 = vadd.f32 %v474, %v475
    %v477 = vsel %vm133, %v468, 0.0
    %v478 = vrot.slane %v477, 4
    %v479 = vadd.f32 %v477, %v478
    %v480 = vrot.slane %v479, 2
    %v481 = vadd.f32 %v479, %v480
    %v482 = vrot.slane %v481, 1
    %v483 = vadd.f32 %v481, %v482
    %v484 = vsel %vm133, %v469, 0.0
    %v485 = vrot.slane %v484, 4
    %v486 = vadd.f32 %v484, %v485
    %v487 = vrot.slane %v486, 2
    %v488 = vadd.f32 %v486, %v487
    %v489 = vrot.slane %v488, 1
    %v490 = vadd.f32 %v488, %v489
    %s491 = scalar_lea.vmem %s1, 16
    %v492 = vld [vmem:[%s491] sm:$0xff]
    %494 = vset.pattern.permute.xlu0 0
    %495 = vperm.xlu0 %494, %v492
    %v496 = vpop.permute.xlu0 %495
    %v498 = vmul.f32 %v55, %v496
    %v499 = vmul.f32 %v56, %v496
    %v500 = vmul.f32 %v57, %v496
    %v501 = vrot.slane %v498, 4
    %v502 = vadd.f32 %v498, %v501
    %v503 = vrot.slane %v502, 2
    %v504 = vadd.f32 %v502, %v503
    %v505 = vrot.slane %v504, 1
    %v506 = vadd.f32 %v504, %v505
    %v507 = vrot.slane %v499, 4
    %v508 = vadd.f32 %v499, %v507
    %v509 = vrot.slane %v508, 2
    %v510 = vadd.f32 %v508, %v509
    %v511 = vrot.slane %v510, 1
    %v512 = vadd.f32 %v510, %v511
    %v513 = vrot.slane %v500, 4
    %v514 = vadd.f32 %v500, %v513
    %v515 = vrot.slane %v514, 2
    %v516 = vadd.f32 %v514, %v515
    %v517 = vrot.slane %v516, 1
    %v518 = vadd.f32 %v516, %v517
    %v519 = vadd.f32 %v476, %v506
    %v520 = vadd.f32 %v483, %v512
    %v521 = vadd.f32 %v490, %v518
    %v525 = vsel %vm210, %v520, %v519
    %v526 = vsel %vm212, %v521, %v525
    %s528 = scalar_lea.vmem %s5, 8
    %529 = vst [vmem:[%s528] sm:$0x7] %v526
    %s530 = scalar_lea.vmem [#allocation2], 12
    %v531 = vld [vmem:[%s530] sm:$0xf]
    %v533 = vsel %vm59, %v531, 0
    %535 = vmatprep.subr.mxu0 0.0
    %536 = vmatpush1.msra.mxu0 %v48
    %537 = vmatprep.subr.mxu0 0.0
    %538 = vmatpush1.msra.mxu0 %v49
    %539 = vmatprep.subr.mxu0 0.0
    %540 = vmatpush1.msra.mxu0 %v50
    %541 = vmatprep.subr.mxu0 0.0
    %542 = vmatpush1.msra.mxu0 %v51
    %543 = vmatprep.subr.mxu0 0.0
    %544 = vmatpush1.msra.mxu0 0.0
    %545 = vmatprep.subr.mxu0 0.0
    %546 = vmatpush1.msra.mxu0 0.0
    %547 = vmatprep.subr.mxu0 0.0
    %548 = vmatpush1.msra.mxu0 0.0
    %549 = vmatprep.subr.mxu0 0.0
    %550 = vmatpush1.msra.mxu0 0.0
    %551 = vmatprep.subr.mxu0 0.0
    %552 = vmatpush1.msra.mxu0 0.0
    %553 = vmatprep.subr.mxu0 0.0
    %554 = vmatpush1.msra.mxu0 0.0
    %555 = vmatprep.subr.mxu0 0.0
    %556 = vmatpush1.msra.mxu0 0.0
    %557 = vmatprep.subr.mxu0 0.0
    %558 = vmatpush1.msra.mxu0 0.0
    %559 = vmatprep.subr.mxu0 0.0
    %560 = vmatpush1.msra.mxu0 0.0
    %561 = vmatprep.subr.mxu0 0.0
    %562 = vmatpush1.msra.mxu0 0.0
    %563 = vmatprep.subr.mxu0 0.0
    %564 = vmatpush1.msra.mxu0 0.0
    %565 = vmatprep.subr.mxu0 0.0
    %566 = vmatpush1.msra.mxu0 0.0
    %567 = vmatprep.subr.mxu0 0.0
    %568 = vmatpush1.msra.mxu0 0.0
    %569 = vmatprep.subr.mxu0 0.0
    %570 = vmatpush1.msra.mxu0 0.0
    %571 = vmatprep.subr.mxu0 0.0
    %572 = vmatpush1.msra.mxu0 0.0
    %573 = vmatprep.subr.mxu0 0.0
    %574 = vmatpush1.msra.mxu0 0.0
    %575 = vmatprep.subr.mxu0 0.0
    %576 = vmatpush1.msra.mxu0 0.0
    %577 = vmatprep.subr.mxu0 0.0
    %578 = vmatpush1.msra.mxu0 0.0
    %579 = vmatprep.subr.mxu0 0.0
    %580 = vmatpush1.msra.mxu0 0.0
    %581 = vmatprep.subr.mxu0 0.0
    %582 = vmatpush1.msra.mxu0 0.0
    %583 = vmatprep.subr.mxu0 0.0
    %584 = vmatpush1.msra.mxu0 0.0
    %585 = vmatprep.subr.mxu0 0.0
    %586 = vmatpush1.msra.mxu0 0.0
    %587 = vmatprep.subr.mxu0 0.0
    %588 = vmatpush1.msra.mxu0 0.0
    %589 = vmatprep.subr.mxu0 0.0
    %590 = vmatpush1.msra.mxu0 0.0
    %591 = vmatprep.subr.mxu0 0.0
    %592 = vmatpush1.msra.mxu0 0.0
    %593 = vmatprep.subr.mxu0 0.0
    %594 = vmatpush1.msra.mxu0 0.0
    %595 = vmatprep.subr.mxu0 0.0
    %596 = vmatpush1.msra.mxu0 0.0
    %597 = vmatprep.subr.mxu0 0.0
    %598 = vmatpush1.msra.mxu0 0.0
    %599 = vmatprep.mubr.f32.mxu0 0.0
    %600 = vmatmul.mubr.f32.gmra.mrb[0].mxu0 %v533
    %v601 = vpop.f32.mrb[0].mxu0
    %v602 = vadd.f32 0.0, %v601
    %v603 = vpop.f32.mrb[0].mxu0
    %604 = vdwg.mxu0
    %v605 = vsel %vm133, %v602, -inf
    %v606 = vrot.slane %v605, 4
    %v607 = vmax.f32 %v605, %v606
    %v608 = vrot.slane %v607, 2
    %v609 = vmax.f32 %v607, %v608
    %v610 = vrot.slane %v609, 1
    %v611 = vmax.f32 %v609, %v610
    %v612 = vsub.f32 %v602, %v611
    %v613 = vmul.f32 %v612, 1.442695
    %v614 = vpow.pop %v613
    %v615 = vsel %vm133, %v614, 0.0
    %v616 = vrot.slane %v615, 4
    %v617 = vadd.f32 %v615, %v616
    %v618 = vrot.slane %v617, 2
    %v619 = vadd.f32 %v617, %v618
    %v620 = vrot.slane %v619, 1
    %v621 = vadd.f32 %v619, %v620
    %v622 = vrcp.pop %v621
    %v623 = vmul.f32 %v614, %v622
    %v624 = vmul.f32 %v52, %v623
    %v625 = vmul.f32 %v53, %v623
    %v626 = vmul.f32 %v54, %v623
    %v627 = vsel %vm133, %v624, 0.0
    %v628 = vrot.slane %v627, 4
    %v629 = vadd.f32 %v627, %v628
    %v630 = vrot.slane %v629, 2
    %v631 = vadd.f32 %v629, %v630
    %v632 = vrot.slane %v631, 1
    %v633 = vadd.f32 %v631, %v632
    %v634 = vsel %vm133, %v625, 0.0
    %v635 = vrot.slane %v634, 4
    %v636 = vadd.f32 %v634, %v635
    %v637 = vrot.slane %v636, 2
    %v638 = vadd.f32 %v636, %v637
    %v639 = vrot.slane %v638, 1
    %v640 = vadd.f32 %v638, %v639
    %v641 = vsel %vm133, %v626, 0.0
    %v642 = vrot.slane %v641, 4
    %v643 = vadd.f32 %v641, %v642
    %v644 = vrot.slane %v643, 2
    %v645 = vadd.f32 %v643, %v644
    %v646 = vrot.slane %v645, 1
    %v647 = vadd.f32 %v645, %v646
    %s648 = scalar_lea.vmem %s1, 24
    %v649 = vld [vmem:[%s648] sm:$0xff]
    %651 = vset.pattern.permute.xlu0 0
    %652 = vperm.xlu0 %651, %v649
    %v653 = vpop.permute.xlu0 %652
    %v655 = vmul.f32 %v55, %v653
    %v656 = vmul.f32 %v56, %v653
    %v657 = vmul.f32 %v57, %v653
    %v658 = vrot.slane %v655, 4
    %v659 = vadd.f32 %v655, %v658
    %v660 = vrot.slane %v659, 2
    %v661 = vadd.f32 %v659, %v660
    %v662 = vrot.slane %v661, 1
    %v663 = vadd.f32 %v661, %v662
    %v664 = vrot.slane %v656, 4
    %v665 = vadd.f32 %v656, %v664
    %v666 = vrot.slane %v665, 2
    %v667 = vadd.f32 %v665, %v666
    %v668 = vrot.slane %v667, 1
    %v669 = vadd.f32 %v667, %v668
    %v670 = vrot.slane %v657, 4
    %v671 = vadd.f32 %v657, %v670
    %v672 = vrot.slane %v671, 2
    %v673 = vadd.f32 %v671, %v672
    %v674 = vrot.slane %v673, 1
    %v675 = vadd.f32 %v673, %v674
    %v676 = vadd.f32 %v633, %v663
    %v677 = vadd.f32 %v640, %v669
    %v678 = vadd.f32 %v647, %v675
    %v682 = vsel %vm210, %v677, %v676
    %v683 = vsel %vm212, %v678, %v682
    %s685 = scalar_lea.vmem %s5, 12
    %686 = vst [vmem:[%s685] sm:$0x7] %v683
    // Predicated region
    $region30: #{tpu_custom_call.1} parent=1 // pred_check
      _
    $region31: #{tpu_custom_call.1} parent=1 // pred_check_branch
      %688 = sbr.rel (0) target = $region33
    $region32: #{tpu_custom_call.1} parent=1 // pred_region
      _
    $region33: #{tpu_custom_call.1} parent=1 // pred_fallthru
      _
    // Predicated region
    $region34: #{tpu_custom_call.1} parent=1 // pred_check
      _
    $region35: #{tpu_custom_call.1} parent=1 // pred_check_branch
      %690 = sbr.rel (0) target = $region37
    $region36: #{tpu_custom_call.1} parent=1 // pred_region
      _
    $region37: #{tpu_custom_call.1} parent=1 // pred_fallthru
      _
    %691 = vsyncpa [#allocation3], 1
    %692 = vsyncpa [#allocation5], 1

</llo_original>
